<compile_context>
chip_gen: v7x
topology: tpu7x:2x2x1
jax: 0.10.0
libtpu: 0.0.40
codegen_flags: <defaults>
</compile_context>

<pallas_src>
import jax
import jax.numpy as jnp
import numpy as np
from jax.experimental import pallas as pl
from jax.experimental.pallas import tpu as pltpu

EPS = 1e-5


def _banded_weight(w_oihw, kh, W):
    """Fold one kh row-tap's kw taps, W-edge zero padding and channel
    contraction into a banded block matrix.

    Returns (W*Cin, W*Cout) with
      M[wi*Cin + ci, wo*Cout + co] = w[co, ci, kh, wi - wo + 1]
    when 0 <= wi - wo + 1 <= 2, else 0 (which implements padding=1 along W).
    """
    Cout, Cin = w_oihw.shape[0], w_oihw.shape[1]
    wk = jnp.transpose(w_oihw[:, :, kh, :], (2, 1, 0))      # (3, Cin, Cout) [kw,ci,co]
    wi = np.arange(W)[:, None]
    wo = np.arange(W)[None, :]
    kw = wi - wo + 1                                        # (W, W) numpy constant
    valid = (kw >= 0) & (kw <= 2)
    blocks = wk[np.clip(kw, 0, 2)]                          # (W, W, Cin, Cout)
    blocks = jnp.where(valid[:, :, None, None], blocks, 0.0)
    return jnp.transpose(blocks, (0, 2, 1, 3)).reshape(W * Cin, W * Cout)


def _make_kernel(N, H, W, Cin, Cout):
    NH = N * H
    inv_n = 1.0 / float(N * H * W)
    assert W & (W - 1) == 0 and W > 0, "lane roll-tree BN reduce needs power-of-two W"
    levels = W.bit_length() - 1

    def conv3x3(x, wb_ref):
        # x: (NH, W*Cg) f32.  wb_ref: (3, W*Cg, W*Cout) bf16 banded weights.
        # Row tap kh reads input row h + kh - 1: a sublane roll of the stacked
        # (n*H + h) rows; rows that would cross an image boundary (or the
        # batch seam) are masked to zero == the conv's zero padding in H.
        h = jax.lax.broadcasted_iota(jnp.int32, (NH, 1), 0) % H
        x_up = jnp.where(h == 0, 0.0, pltpu.roll(x, shift=1, axis=0))
        x_dn = jnp.where(h == H - 1, 0.0, pltpu.roll(x, shift=NH - 1, axis=0))
        acc = jnp.dot(x_up.astype(jnp.bfloat16), wb_ref[0],
                      preferred_element_type=jnp.float32)
        acc += jnp.dot(x.astype(jnp.bfloat16), wb_ref[1],
                       preferred_element_type=jnp.float32)
        acc += jnp.dot(x_dn.astype(jnp.bfloat16), wb_ref[2],
                       preferred_element_type=jnp.float32)
        return acc                                          # (NH, W*Cout) f32

    def bn_relu(acc, gamma, beta):
        # Training-mode BatchNorm2d over (N, H, W), biased variance.
        # gamma/beta arrive pre-tiled to (1, W*Cout).
        # TODO(synk): single-pass E[y^2]-E[y]^2 can cancel badly for real
        # activations at production sizes; use two-pass/Welford there.
        s = jnp.sum(acc, axis=0, keepdims=True)             # (1, W*Cout)
        sq = jnp.sum(acc * acc, axis=0, keepdims=True)
        for k in range(levels):                             # lane roll-tree: after
            sh = Cout << k                                  # log2(W) steps every lane
            s = s + pltpu.roll(s, shift=sh, axis=1)         # holds its channel's
            sq = sq + pltpu.roll(sq, shift=sh, axis=1)      # total over all w.
        mean = s * inv_n
        var = jnp.maximum(sq * inv_n - mean * mean, 0.0)
        scale = gamma * jax.lax.rsqrt(var + EPS)
        shift = beta - mean * scale
        return jnp.maximum(acc * scale + shift, 0.0)

    def kernel(x_ref, w1_ref, g1_ref, b1_ref, w2_ref, g2_ref, b2_ref, out_ref):
        h1 = bn_relu(conv3x3(x_ref[...], w1_ref), g1_ref[...], b1_ref[...])
        h2 = bn_relu(conv3x3(h1, w2_ref), g2_ref[...], b2_ref[...])
        out_ref[...] = h2                                   # lane-dense (NH, W*Cout)

    return kernel


def conv_block_forward(x_nchw, params):
    """Pallas forward.  x_nchw: (N, Cin, H, W) f32 -> (N, Cout, H, W) f32.

    NOTE: BatchNorm runs in training mode (batch statistics, fresh-module
    default); the conv bias is dropped inside the kernel because the
    batch-mean subtraction cancels it exactly.  Not valid for eval-mode
    (running-stats) BN.
    """
    N, Cin, H, W = x_nchw.shape
    Cout = params["w1"].shape[0]

    # NCHW -> (N*H, W*Cin) lane-packed rows (channel fastest within a pixel).
    # TODO(synk): keep the whole network in this layout at production sizes so
    # these wrapper transposes (extra HBM passes) disappear.
    x2d = (jnp.transpose(x_nchw, (0, 2, 3, 1))
           .reshape(N * H, W * Cin).astype(jnp.float32))

    wb1 = jnp.stack([_banded_weight(params["w1"], kh, W)
                     for kh in range(3)]).astype(jnp.bfloat16)
    wb2 = jnp.stack([_banded_weight(params["w2"], kh, W)
                     for kh in range(3)]).astype(jnp.bfloat16)

    def tile_c(v):                                          # (Cout,) -> (1, W*Cout)
        return jnp.tile(v.reshape(1, Cout).astype(jnp.float32), (1, W))

    g1t, be1t = tile_c(params["g1"]), tile_c(params["be1"])
    g2t, be2t = tile_c(params["g2"]), tile_c(params["be2"])
    # Conv biases b1/b2 are NOT passed: train-mode BN cancels them exactly.

    vmem = pl.BlockSpec(memory_space=pltpu.MemorySpace.VMEM)
    out2d = pl.pallas_call(
        _make_kernel(N, H, W, Cin, Cout),
        out_shape=jax.ShapeDtypeStruct((N * H, W * Cout), jnp.float32),
        in_specs=[vmem] * 7,
        out_specs=vmem,
    )(x2d, wb1, g1t, be1t, wb2, g2t, be2t)

    # (N*H, W*Cout) -> NCHW to match nn.Conv2d output convention.
    return jnp.transpose(out2d.reshape(N, H, W, Cout), (0, 3, 1, 2))


def conv_block_reference(x, params, mxu_bf16=False):
    """Pure-JAX reference (NCHW), mirrors the PyTorch module in training mode.

    mxu_bf16=True rounds the conv operands to bf16 (the kernel's MXU input
    precision) so the kernel's structure can be checked with a tight tolerance.
    """
    cast = ((lambda t: t.astype(jnp.bfloat16).astype(jnp.float32))
            if mxu_bf16 else (lambda t: t))

    def conv(x, w, b):
        y = jax.lax.conv_general_dilated(
            cast(x), cast(w), window_strides=(1, 1), padding=((1, 1), (1, 1)),
            dimension_numbers=("NCHW", "OIHW", "NCHW"),
            precision=jax.lax.Precision.HIGHEST)
        return y + b[None, :, None, None]

    def bn_relu(y, g, be):
        mean = jnp.mean(y, axis=(0, 2, 3), keepdims=True)
        var = jnp.mean((y - mean) ** 2, axis=(0, 2, 3), keepdims=True)
        yhat = (y - mean) / jnp.sqrt(var + EPS)
        return jnp.maximum(yhat * g[None, :, None, None] + be[None, :, None, None], 0.0)

    y = bn_relu(conv(x, params["w1"], params["b1"]), params["g1"], params["be1"])
    y = bn_relu(conv(y, params["w2"], params["b2"]), params["g2"], params["be2"])
    return y


if __name__ == "__main__":
    key = jax.random.PRNGKey(0)
    N, Cin, Cout, H, W = 2, 4, 8, 16, 16
    ks = jax.random.split(key, 9)

    x = jax.random.normal(ks[0], (N, Cin, H, W), jnp.float32)
    params = {
        "w1": jax.random.normal(ks[1], (Cout, Cin, 3, 3), jnp.float32) * 0.2,
        "b1": jax.random.normal(ks[2], (Cout,), jnp.float32) * 0.1,
        "g1": jax.random.uniform(ks[3], (Cout,), jnp.float32, 0.5, 1.5),
        "be1": jax.random.normal(ks[4], (Cout,), jnp.float32) * 0.1,
        "w2": jax.random.normal(ks[5], (Cout, Cout, 3, 3), jnp.float32) * 0.2,
        "b2": jax.random.normal(ks[6], (Cout,), jnp.float32) * 0.1,
        "g2": jax.random.uniform(ks[7], (Cout,), jnp.float32, 0.5, 1.5),
        "be2": jax.random.normal(ks[8], (Cout,), jnp.float32) * 0.1,
    }

    out = jax.block_until_ready(jax.jit(conv_block_forward)(x, params))
    assert out.shape == (N, Cout, H, W), out.shape

    # Tight check: reference with conv operands rounded to bf16 (same MXU input
    # precision as the kernel) -> verifies the fused conv/BN/ReLU math.
    ref_bf16 = jax.block_until_ready(conv_block_reference(x, params, mxu_bf16=True))
    np.testing.assert_allclose(np.asarray(out), np.asarray(ref_bf16),
                               rtol=2e-3, atol=2e-3)

    # Loose check: full-f32 PyTorch-faithful reference; the only deviation is
    # bf16 rounding of the MXU operands (deliberate, per perf review).
    ref_f32 = jax.block_until_ready(conv_block_reference(x, params, mxu_bf16=False))
    np.testing.assert_allclose(np.asarray(out), np.asarray(ref_f32),
                               rtol=5e-2, atol=5e-2)

    print("KERNEL_OK")
</pallas_src>

<mosaic_0001>
module attributes {stable_mosaic.version = 11 : i64} {
  func.func @kernel(%arg0: memref<32x64xf32, #tpu.memory_space<vmem>>, %arg1: memref<3x64x128xbf16, #tpu.memory_space<vmem>>, %arg2: memref<1x128xf32, #tpu.memory_space<vmem>>, %arg3: memref<1x128xf32, #tpu.memory_space<vmem>>, %arg4: memref<3x128x128xbf16, #tpu.memory_space<vmem>>, %arg5: memref<1x128xf32, #tpu.memory_space<vmem>>, %arg6: memref<1x128xf32, #tpu.memory_space<vmem>>, %arg7: memref<32x128xf32, #tpu.memory_space<vmem>>) attributes {dimension_semantics = [], scalar_prefetch = 0 : i64, scratch_operands = 0 : i64, tpu.core_type = #tpu.core_type<tc>} {
    %c0 = arith.constant 0 : index
    %c0_0 = arith.constant 0 : index
    %0 = vector.load %arg0[%c0, %c0_0] : memref<32x64xf32, #tpu.memory_space<vmem>>, vector<32x64xf32>
    %1 = tpu.iota {dimensions = array<i32: 0>} : vector<32x1xi32>
    %c16_i32 = arith.constant 16 : i32
    %c0_i32 = arith.constant 0 : i32
    %2 = arith.cmpi eq, %c16_i32, %c0_i32 : i32
    %c1_i32 = arith.constant 1 : i32
    %3 = arith.select %2, %c1_i32, %c16_i32 : i32
    %4 = vector.broadcast %3 : i32 to vector<32x1xi32>
    %5 = arith.remsi %1, %4 : vector<32x1xi32>
    %c0_i32_1 = arith.constant 0 : i32
    %6 = vector.broadcast %c0_i32_1 : i32 to vector<32x1xi32>
    %7 = arith.cmpi ne, %5, %6 : vector<32x1xi32>
    %c0_i32_2 = arith.constant 0 : i32
    %8 = vector.broadcast %c0_i32_2 : i32 to vector<32x1xi32>
    %9 = arith.cmpi slt, %5, %8 : vector<32x1xi32>
    %c0_i32_3 = arith.constant 0 : i32
    %10 = arith.cmpi slt, %3, %c0_i32_3 : i32
    %11 = vector.broadcast %10 : i1 to vector<32x1xi1>
    %12 = vector.broadcast %11 : vector<32x1xi1> to vector<32x1xi1>
    %13 = arith.xori %9, %12 : vector<32x1xi1>
    %14 = arith.andi %13, %7 : vector<32x1xi1>
    %15 = vector.broadcast %3 : i32 to vector<32x1xi32>
    %16 = arith.addi %5, %15 : vector<32x1xi32>
    %17 = arith.select %14, %16, %5 : vector<32x1xi1>, vector<32x1xi32>
    %c0_i32_4 = arith.constant 0 : i32
    %18 = vector.broadcast %c0_i32_4 : i32 to vector<32x1xi32>
    %19 = arith.cmpi eq, %17, %18 : vector<32x1xi32>
    %c1_i32_5 = arith.constant 1 : i32
    %20 = tpu.dynamic_rotate %0 by %c1_i32_5 dim 0 : vector<32x64xf32>, i32 -> vector<32x64xf32>
    %cst = arith.constant 0.000000e+00 : f32
    %21 = vector.shape_cast %19 : vector<32x1xi1> to vector<32x1xi1>
    %22 = vector.broadcast %21 : vector<32x1xi1> to vector<32x64xi1>
    %23 = vector.broadcast %cst : f32 to vector<32x64xf32>
    %24 = arith.select %22, %23, %20 : vector<32x64xi1>, vector<32x64xf32>
    %c15_i32 = arith.constant 15 : i32
    %25 = vector.broadcast %c15_i32 : i32 to vector<32x1xi32>
    %26 = arith.cmpi eq, %17, %25 : vector<32x1xi32>
    %c31_i32 = arith.constant 31 : i32
    %27 = tpu.dynamic_rotate %0 by %c31_i32 dim 0 : vector<32x64xf32>, i32 -> vector<32x64xf32>
    %cst_6 = arith.constant 0.000000e+00 : f32
    %28 = vector.shape_cast %26 : vector<32x1xi1> to vector<32x1xi1>
    %29 = vector.broadcast %28 : vector<32x1xi1> to vector<32x64xi1>
    %30 = vector.broadcast %cst_6 : f32 to vector<32x64xf32>
    %31 = arith.select %29, %30, %27 : vector<32x64xi1>, vector<32x64xf32>
    %32 = arith.truncf %24 : vector<32x64xf32> to vector<32x64xbf16>
    %c0_7 = arith.constant 0 : index
    %c0_8 = arith.constant 0 : index
    %c0_9 = arith.constant 0 : index
    %33 = vector.load %arg1[%c0_7, %c0_8, %c0_9] : memref<3x64x128xbf16, #tpu.memory_space<vmem>>, vector<1x64x128xbf16>
    %34 = vector.shape_cast %33 : vector<1x64x128xbf16> to vector<64x128xbf16>
    %cst_10 = arith.constant dense<0.000000e+00> : vector<32x128xf32>
    %35 = tpu.matmul %32, %34, %cst_10 {dimension_numbers = #tpu.dot_dimension_numbers<[1], [0], [0], [1], [0, 0, 1, 1], [], []>} : vector<32x64xbf16>, vector<64x128xbf16>, vector<32x128xf32> -> vector<32x128xf32>
    %36 = arith.truncf %0 : vector<32x64xf32> to vector<32x64xbf16>
    %c1 = arith.constant 1 : index
    %c0_11 = arith.constant 0 : index
    %c0_12 = arith.constant 0 : index
    %37 = vector.load %arg1[%c1, %c0_11, %c0_12] : memref<3x64x128xbf16, #tpu.memory_space<vmem>>, vector<1x64x128xbf16>
    %38 = vector.shape_cast %37 : vector<1x64x128xbf16> to vector<64x128xbf16>
    %cst_13 = arith.constant dense<0.000000e+00> : vector<32x128xf32>
    %39 = tpu.matmul %36, %38, %cst_13 {dimension_numbers = #tpu.dot_dimension_numbers<[1], [0], [0], [1], [0, 0, 1, 1], [], []>} : vector<32x64xbf16>, vector<64x128xbf16>, vector<32x128xf32> -> vector<32x128xf32>
    %40 = arith.addf %35, %39 : vector<32x128xf32>
    %41 = arith.truncf %31 : vector<32x64xf32> to vector<32x64xbf16>
    %c2 = arith.constant 2 : index
    %c0_14 = arith.constant 0 : index
    %c0_15 = arith.constant 0 : index
    %42 = vector.load %arg1[%c2, %c0_14, %c0_15] : memref<3x64x128xbf16, #tpu.memory_space<vmem>>, vector<1x64x128xbf16>
    %43 = vector.shape_cast %42 : vector<1x64x128xbf16> to vector<64x128xbf16>
    %cst_16 = arith.constant dense<0.000000e+00> : vector<32x128xf32>
    %44 = tpu.matmul %41, %43, %cst_16 {dimension_numbers = #tpu.dot_dimension_numbers<[1], [0], [0], [1], [0, 0, 1, 1], [], []>} : vector<32x64xbf16>, vector<64x128xbf16>, vector<32x128xf32> -> vector<32x128xf32>
    %45 = arith.addf %40, %44 : vector<32x128xf32>
    %c0_17 = arith.constant 0 : index
    %c0_18 = arith.constant 0 : index
    %46 = vector.load %arg2[%c0_17, %c0_18] : memref<1x128xf32, #tpu.memory_space<vmem>>, vector<1x128xf32>
    %c0_19 = arith.constant 0 : index
    %c0_20 = arith.constant 0 : index
    %47 = vector.load %arg3[%c0_19, %c0_20] : memref<1x128xf32, #tpu.memory_space<vmem>>, vector<1x128xf32>
    %cst_21 = arith.constant dense<0.000000e+00> : vector<128xf32>
    %48 = vector.multi_reduction <add>, %45, %cst_21 [0] : vector<32x128xf32> to vector<128xf32>
    %49 = vector.shape_cast %48 : vector<128xf32> to vector<1x128xf32>
    %50 = arith.mulf %45, %45 : vector<32x128xf32>
    %cst_22 = arith.constant dense<0.000000e+00> : vector<128xf32>
    %51 = vector.multi_reduction <add>, %50, %cst_22 [0] : vector<32x128xf32> to vector<128xf32>
    %52 = vector.shape_cast %51 : vector<128xf32> to vector<1x128xf32>
    %c8_i32 = arith.constant 8 : i32
    %53 = tpu.dynamic_rotate %49 by %c8_i32 dim 1 : vector<1x128xf32>, i32 -> vector<1x128xf32>
    %54 = arith.addf %49, %53 : vector<1x128xf32>
    %c8_i32_23 = arith.constant 8 : i32
    %55 = tpu.dynamic_rotate %52 by %c8_i32_23 dim 1 : vector<1x128xf32>, i32 -> vector<1x128xf32>
    %56 = arith.addf %52, %55 : vector<1x128xf32>
    %c16_i32_24 = arith.constant 16 : i32
    %57 = tpu.dynamic_rotate %54 by %c16_i32_24 dim 1 : vector<1x128xf32>, i32 -> vector<1x128xf32>
    %58 = arith.addf %54, %57 : vector<1x128xf32>
    %c16_i32_25 = arith.constant 16 : i32
    %59 = tpu.dynamic_rotate %56 by %c16_i32_25 dim 1 : vector<1x128xf32>, i32 -> vector<1x128xf32>
    %60 = arith.addf %56, %59 : vector<1x128xf32>
    %c32_i32 = arith.constant 32 : i32
    %61 = tpu.dynamic_rotate %58 by %c32_i32 dim 1 : vector<1x128xf32>, i32 -> vector<1x128xf32>
    %62 = arith.addf %58, %61 : vector<1x128xf32>
    %c32_i32_26 = arith.constant 32 : i32
    %63 = tpu.dynamic_rotate %60 by %c32_i32_26 dim 1 : vector<1x128xf32>, i32 -> vector<1x128xf32>
    %64 = arith.addf %60, %63 : vector<1x128xf32>
    %c64_i32 = arith.constant 64 : i32
    %65 = tpu.dynamic_rotate %62 by %c64_i32 dim 1 : vector<1x128xf32>, i32 -> vector<1x128xf32>
    %66 = arith.addf %62, %65 : vector<1x128xf32>
    %c64_i32_27 = arith.constant 64 : i32
    %67 = tpu.dynamic_rotate %64 by %c64_i32_27 dim 1 : vector<1x128xf32>, i32 -> vector<1x128xf32>
    %68 = arith.addf %64, %67 : vector<1x128xf32>
    %cst_28 = arith.constant 0.001953125 : f32
    %69 = vector.broadcast %cst_28 : f32 to vector<1x128xf32>
    %70 = arith.mulf %66, %69 : vector<1x128xf32>
    %cst_29 = arith.constant 0.001953125 : f32
    %71 = vector.broadcast %cst_29 : f32 to vector<1x128xf32>
    %72 = arith.mulf %68, %71 : vector<1x128xf32>
    %73 = arith.mulf %70, %70 : vector<1x128xf32>
    %74 = arith.subf %72, %73 : vector<1x128xf32>
    %cst_30 = arith.constant 0.000000e+00 : f32
    %75 = vector.broadcast %cst_30 : f32 to vector<1x128xf32>
    %76 = arith.maximumf %74, %75 : vector<1x128xf32>
    %cst_31 = arith.constant 9.99999974E-6 : f32
    %77 = vector.broadcast %cst_31 : f32 to vector<1x128xf32>
    %78 = arith.addf %76, %77 : vector<1x128xf32>
    %79 = math.rsqrt %78 : vector<1x128xf32>
    %80 = arith.mulf %46, %79 : vector<1x128xf32>
    %81 = arith.mulf %70, %80 : vector<1x128xf32>
    %82 = arith.subf %47, %81 : vector<1x128xf32>
    %83 = vector.broadcast %80 : vector<1x128xf32> to vector<32x128xf32>
    %84 = arith.mulf %45, %83 : vector<32x128xf32>
    %85 = vector.broadcast %82 : vector<1x128xf32> to vector<32x128xf32>
    %86 = arith.addf %84, %85 : vector<32x128xf32>
    %cst_32 = arith.constant 0.000000e+00 : f32
    %87 = vector.broadcast %cst_32 : f32 to vector<32x128xf32>
    %88 = arith.maximumf %86, %87 : vector<32x128xf32>
    %89 = tpu.iota {dimensions = array<i32: 0>} : vector<32x1xi32>
    %c16_i32_33 = arith.constant 16 : i32
    %c0_i32_34 = arith.constant 0 : i32
    %90 = arith.cmpi eq, %c16_i32_33, %c0_i32_34 : i32
    %c1_i32_35 = arith.constant 1 : i32
    %91 = arith.select %90, %c1_i32_35, %c16_i32_33 : i32
    %92 = vector.broadcast %91 : i32 to vector<32x1xi32>
    %93 = arith.remsi %89, %92 : vector<32x1xi32>
    %c0_i32_36 = arith.constant 0 : i32
    %94 = vector.broadcast %c0_i32_36 : i32 to vector<32x1xi32>
    %95 = arith.cmpi ne, %93, %94 : vector<32x1xi32>
    %c0_i32_37 = arith.constant 0 : i32
    %96 = vector.broadcast %c0_i32_37 : i32 to vector<32x1xi32>
    %97 = arith.cmpi slt, %93, %96 : vector<32x1xi32>
    %c0_i32_38 = arith.constant 0 : i32
    %98 = arith.cmpi slt, %91, %c0_i32_38 : i32
    %99 = vector.broadcast %98 : i1 to vector<32x1xi1>
    %100 = vector.broadcast %99 : vector<32x1xi1> to vector<32x1xi1>
    %101 = arith.xori %97, %100 : vector<32x1xi1>
    %102 = arith.andi %101, %95 : vector<32x1xi1>
    %103 = vector.broadcast %91 : i32 to vector<32x1xi32>
    %104 = arith.addi %93, %103 : vector<32x1xi32>
    %105 = arith.select %102, %104, %93 : vector<32x1xi1>, vector<32x1xi32>
    %c0_i32_39 = arith.constant 0 : i32
    %106 = vector.broadcast %c0_i32_39 : i32 to vector<32x1xi32>
    %107 = arith.cmpi eq, %105, %106 : vector<32x1xi32>
    %c1_i32_40 = arith.constant 1 : i32
    %108 = tpu.dynamic_rotate %88 by %c1_i32_40 dim 0 : vector<32x128xf32>, i32 -> vector<32x128xf32>
    %cst_41 = arith.constant 0.000000e+00 : f32
    %109 = vector.shape_cast %107 : vector<32x1xi1> to vector<32x1xi1>
    %110 = vector.broadcast %109 : vector<32x1xi1> to vector<32x128xi1>
    %111 = vector.broadcast %cst_41 : f32 to vector<32x128xf32>
    %112 = arith.select %110, %111, %108 : vector<32x128xi1>, vector<32x128xf32>
    %c15_i32_42 = arith.constant 15 : i32
    %113 = vector.broadcast %c15_i32_42 : i32 to vector<32x1xi32>
    %114 = arith.cmpi eq, %105, %113 : vector<32x1xi32>
    %c31_i32_43 = arith.constant 31 : i32
    %115 = tpu.dynamic_rotate %88 by %c31_i32_43 dim 0 : vector<32x128xf32>, i32 -> vector<32x128xf32>
    %cst_44 = arith.constant 0.000000e+00 : f32
    %116 = vector.shape_cast %114 : vector<32x1xi1> to vector<32x1xi1>
    %117 = vector.broadcast %116 : vector<32x1xi1> to vector<32x128xi1>
    %118 = vector.broadcast %cst_44 : f32 to vector<32x128xf32>
    %119 = arith.select %117, %118, %115 : vector<32x128xi1>, vector<32x128xf32>
    %120 = arith.truncf %112 : vector<32x128xf32> to vector<32x128xbf16>
    %c0_45 = arith.constant 0 : index
    %c0_46 = arith.constant 0 : index
    %c0_47 = arith.constant 0 : index
    %121 = vector.load %arg4[%c0_45, %c0_46, %c0_47] : memref<3x128x128xbf16, #tpu.memory_space<vmem>>, vector<1x128x128xbf16>
    %122 = vector.shape_cast %121 : vector<1x128x128xbf16> to vector<128x128xbf16>
    %cst_48 = arith.constant dense<0.000000e+00> : vector<32x128xf32>
    %123 = tpu.matmul %120, %122, %cst_48 {dimension_numbers = #tpu.dot_dimension_numbers<[1], [0], [0], [1], [0, 0, 1, 1], [], []>} : vector<32x128xbf16>, vector<128x128xbf16>, vector<32x128xf32> -> vector<32x128xf32>
    %124 = arith.truncf %88 : vector<32x128xf32> to vector<32x128xbf16>
    %c1_49 = arith.constant 1 : index
    %c0_50 = arith.constant 0 : index
    %c0_51 = arith.constant 0 : index
    %125 = vector.load %arg4[%c1_49, %c0_50, %c0_51] : memref<3x128x128xbf16, #tpu.memory_space<vmem>>, vector<1x128x128xbf16>
    %126 = vector.shape_cast %125 : vector<1x128x128xbf16> to vector<128x128xbf16>
    %cst_52 = arith.constant dense<0.000000e+00> : vector<32x128xf32>
    %127 = tpu.matmul %124, %126, %cst_52 {dimension_numbers = #tpu.dot_dimension_numbers<[1], [0], [0], [1], [0, 0, 1, 1], [], []>} : vector<32x128xbf16>, vector<128x128xbf16>, vector<32x128xf32> -> vector<32x128xf32>
    %128 = arith.addf %123, %127 : vector<32x128xf32>
    %129 = arith.truncf %119 : vector<32x128xf32> to vector<32x128xbf16>
    %c2_53 = arith.constant 2 : index
    %c0_54 = arith.constant 0 : index
    %c0_55 = arith.constant 0 : index
    %130 = vector.load %arg4[%c2_53, %c0_54, %c0_55] : memref<3x128x128xbf16, #tpu.memory_space<vmem>>, vector<1x128x128xbf16>
    %131 = vector.shape_cast %130 : vector<1x128x128xbf16> to vector<128x128xbf16>
    %cst_56 = arith.constant dense<0.000000e+00> : vector<32x128xf32>
    %132 = tpu.matmul %129, %131, %cst_56 {dimension_numbers = #tpu.dot_dimension_numbers<[1], [0], [0], [1], [0, 0, 1, 1], [], []>} : vector<32x128xbf16>, vector<128x128xbf16>, vector<32x128xf32> -> vector<32x128xf32>
    %133 = arith.addf %128, %132 : vector<32x128xf32>
    %c0_57 = arith.constant 0 : index
    %c0_58 = arith.constant 0 : index
    %134 = vector.load %arg5[%c0_57, %c0_58] : memref<1x128xf32, #tpu.memory_space<vmem>>, vector<1x128xf32>
    %c0_59 = arith.constant 0 : index
    %c0_60 = arith.constant 0 : index
    %135 = vector.load %arg6[%c0_59, %c0_60] : memref<1x128xf32, #tpu.memory_space<vmem>>, vector<1x128xf32>
    %cst_61 = arith.constant dense<0.000000e+00> : vector<128xf32>
    %136 = vector.multi_reduction <add>, %133, %cst_61 [0] : vector<32x128xf32> to vector<128xf32>
    %137 = vector.shape_cast %136 : vector<128xf32> to vector<1x128xf32>
    %138 = arith.mulf %133, %133 : vector<32x128xf32>
    %cst_62 = arith.constant dense<0.000000e+00> : vector<128xf32>
    %139 = vector.multi_reduction <add>, %138, %cst_62 [0] : vector<32x128xf32> to vector<128xf32>
    %140 = vector.shape_cast %139 : vector<128xf32> to vector<1x128xf32>
    %c8_i32_63 = arith.constant 8 : i32
    %141 = tpu.dynamic_rotate %137 by %c8_i32_63 dim 1 : vector<1x128xf32>, i32 -> vector<1x128xf32>
    %142 = arith.addf %137, %141 : vector<1x128xf32>
    %c8_i32_64 = arith.constant 8 : i32
    %143 = tpu.dynamic_rotate %140 by %c8_i32_64 dim 1 : vector<1x128xf32>, i32 -> vector<1x128xf32>
    %144 = arith.addf %140, %143 : vector<1x128xf32>
    %c16_i32_65 = arith.constant 16 : i32
    %145 = tpu.dynamic_rotate %142 by %c16_i32_65 dim 1 : vector<1x128xf32>, i32 -> vector<1x128xf32>
    %146 = arith.addf %142, %145 : vector<1x128xf32>
    %c16_i32_66 = arith.constant 16 : i32
    %147 = tpu.dynamic_rotate %144 by %c16_i32_66 dim 1 : vector<1x128xf32>, i32 -> vector<1x128xf32>
    %148 = arith.addf %144, %147 : vector<1x128xf32>
    %c32_i32_67 = arith.constant 32 : i32
    %149 = tpu.dynamic_rotate %146 by %c32_i32_67 dim 1 : vector<1x128xf32>, i32 -> vector<1x128xf32>
    %150 = arith.addf %146, %149 : vector<1x128xf32>
    %c32_i32_68 = arith.constant 32 : i32
    %151 = tpu.dynamic_rotate %148 by %c32_i32_68 dim 1 : vector<1x128xf32>, i32 -> vector<1x128xf32>
    %152 = arith.addf %148, %151 : vector<1x128xf32>
    %c64_i32_69 = arith.constant 64 : i32
    %153 = tpu.dynamic_rotate %150 by %c64_i32_69 dim 1 : vector<1x128xf32>, i32 -> vector<1x128xf32>
    %154 = arith.addf %150, %153 : vector<1x128xf32>
    %c64_i32_70 = arith.constant 64 : i32
    %155 = tpu.dynamic_rotate %152 by %c64_i32_70 dim 1 : vector<1x128xf32>, i32 -> vector<1x128xf32>
    %156 = arith.addf %152, %155 : vector<1x128xf32>
    %cst_71 = arith.constant 0.001953125 : f32
    %157 = vector.broadcast %cst_71 : f32 to vector<1x128xf32>
    %158 = arith.mulf %154, %157 : vector<1x128xf32>
    %cst_72 = arith.constant 0.001953125 : f32
    %159 = vector.broadcast %cst_72 : f32 to vector<1x128xf32>
    %160 = arith.mulf %156, %159 : vector<1x128xf32>
    %161 = arith.mulf %158, %158 : vector<1x128xf32>
    %162 = arith.subf %160, %161 : vector<1x128xf32>
    %cst_73 = arith.constant 0.000000e+00 : f32
    %163 = vector.broadcast %cst_73 : f32 to vector<1x128xf32>
    %164 = arith.maximumf %162, %163 : vector<1x128xf32>
    %cst_74 = arith.constant 9.99999974E-6 : f32
    %165 = vector.broadcast %cst_74 : f32 to vector<1x128xf32>
    %166 = arith.addf %164, %165 : vector<1x128xf32>
    %167 = math.rsqrt %166 : vector<1x128xf32>
    %168 = arith.mulf %134, %167 : vector<1x128xf32>
    %169 = arith.mulf %158, %168 : vector<1x128xf32>
    %170 = arith.subf %135, %169 : vector<1x128xf32>
    %171 = vector.broadcast %168 : vector<1x128xf32> to vector<32x128xf32>
    %172 = arith.mulf %133, %171 : vector<32x128xf32>
    %173 = vector.broadcast %170 : vector<1x128xf32> to vector<32x128xf32>
    %174 = arith.addf %172, %173 : vector<32x128xf32>
    %cst_75 = arith.constant 0.000000e+00 : f32
    %175 = vector.broadcast %cst_75 : f32 to vector<32x128xf32>
    %176 = arith.maximumf %174, %175 : vector<32x128xf32>
    %c0_76 = arith.constant 0 : index
    %c0_77 = arith.constant 0 : index
    %177 = vector.load %arg7[%c0_76, %c0_77] : memref<32x128xf32, #tpu.memory_space<vmem>>, vector<32x128xf32>
    tpu.vector_store %arg7[%c0_76, %c0_77], %176 {strides = array<i32>} : memref<32x128xf32, #tpu.memory_space<vmem>>, vector<32x128xf32>,
    return
  }
}

</mosaic_0001>

<llo_original>
// kernel: conv_block_forward.1
$region0: #{conv_block_forward.1}
  #allocation0 [shape = 'u32[]', space=smem, size = 0x4, offset = 0x4, fixed_abs, tag = 'smem constant byte address 0x4 - core index']
  #allocation1 [shape = 'u32[144,128]{1,0:T(1,128)}', space=vmem, size = 0x12000, scoped, tag = 'internal scratch']
  %s0 = inlined_call_operand.vmem [shape: f32[32,64], index: 0, kind: input, shape index: {}]
  %s1 = inlined_call_operand.vmem [shape: bf16[3,64,128], index: 1, kind: input, shape index: {}]
  %s2 = inlined_call_operand.vmem [shape: f32[1,128], index: 2, kind: input, shape index: {}]
  %s3 = inlined_call_operand.vmem [shape: f32[1,128], index: 3, kind: input, shape index: {}]
  %s4 = inlined_call_operand.vmem [shape: bf16[3,128,128], index: 4, kind: input, shape index: {}]
  %s5 = inlined_call_operand.vmem [shape: f32[1,128], index: 5, kind: input, shape index: {}]
  %s6 = inlined_call_operand.vmem [shape: f32[1,128], index: 6, kind: input, shape index: {}]
  %s7 = inlined_call_operand.vmem [shape: f32[32,128], index: 7, kind: output, shape index: {}]
  %s8 = sld [smem:[#allocation0]]
  $region38: #{conv_block_forward.1} parent=0
    _
  %s10 = ssub.s32 1, %s8
  %s11 = scalar_select 0, %s10, %s8
  // Predicated region
  $region2: #{conv_block_forward.1} parent=0 // pred_check
    _
  $region3: #{conv_block_forward.1} parent=0 // pred_check_branch
    %13 = sbr.rel (0) target = $region5
  $region4: #{conv_block_forward.1} parent=0 // pred_region
    _
  $region5: #{conv_block_forward.1} parent=0 // pred_fallthru
    _
  // Predicated region
  $region6: #{conv_block_forward.1} parent=0 // pred_check
    _
  $region7: #{conv_block_forward.1} parent=0 // pred_check_branch
    %15 = sbr.rel (0) target = $region9
  $region8: #{conv_block_forward.1} parent=0 // pred_region
    _
  $region9: #{conv_block_forward.1} parent=0 // pred_fallthru
    _
  // Predicated region
  $region10: #{conv_block_forward.1} parent=0 // pred_check
    _
  $region11: #{conv_block_forward.1} parent=0 // pred_check_branch
    %17 = sbr.rel (0) target = $region13
  $region12: #{conv_block_forward.1} parent=0 // pred_region
    _
  $region13: #{conv_block_forward.1} parent=0 // pred_fallthru
    _
  // Predicated region
  $region14: #{conv_block_forward.1} parent=0 // pred_check
    _
  $region15: #{conv_block_forward.1} parent=0 // pred_check_branch
    %19 = sbr.rel (0) target = $region17
  $region16: #{conv_block_forward.1} parent=0 // pred_region
    _
  $region17: #{conv_block_forward.1} parent=0 // pred_fallthru
    _
  // Predicated region
  $region18: #{conv_block_forward.1} parent=0 // pred_check
    _
  $region19: #{conv_block_forward.1} parent=0 // pred_check_branch
    %21 = sbr.rel (0) target = $region21
  $region20: #{conv_block_forward.1} parent=0 // pred_region
    _
  $region21: #{conv_block_forward.1} parent=0 // pred_fallthru
    _
  // Predicated region
  $region22: #{conv_block_forward.1} parent=0 // pred_check
    _
  $region23: #{conv_block_forward.1} parent=0 // pred_check_branch
    %23 = sbr.rel (0) target = $region25
  $region24: #{conv_block_forward.1} parent=0 // pred_region
    _
  $region25: #{conv_block_forward.1} parent=0 // pred_fallthru
    _
  // Predicated region
  $region26: #{conv_block_forward.1} parent=0 // pred_check
    _
  $region27: #{conv_block_forward.1} parent=0 // pred_check_branch
    %25 = sbr.rel (0) target = $region29
  $region28: #{conv_block_forward.1} parent=0 // pred_region
    _
  $region29: #{conv_block_forward.1} parent=0 // pred_fallthru
    _
  %v27 = vld [vmem:[%s0] sm:$0xff]
  %v28 = vld [vmem:[%s0 + $0x8] sm:$0xff]
  %v29 = vld [vmem:[%s0 + $0x10] sm:$0xff]
  %v30 = vld [vmem:[%s0 + $0x18] sm:$0xff]
  %v31 = vlaneseq
  %v32 = vshrl.u32 %v31, 7
  %v33 = vadd.s32 %v32, 8
  %v34 = vadd.s32 %v32, 16
  %v35 = vadd.s32 %v32, 24
  %vm36 = vcmp.lt.s32.totalorder %v32, 0
  %v37 = vsub.s32 0, %v32
  %v38 = vsel %vm36, %v37, %v32
  %v39 = vshrl.u32 %v38, 4
  %v40 = vand.u32 %v38, 15
  %v41 = vsub.s32 0, %v40
  %v42 = vsel %vm36, %v41, %v40
  %vm43 = vcmp.lt.s32.totalorder %v33, 0
  %v44 = vsub.s32 0, %v33
  %v45 = vsel %vm43, %v44, %v33
  %v46 = vshrl.u32 %v45, 4
  %v47 = vand.u32 %v45, 15
  %v48 = vsub.s32 0, %v47
  %v49 = vsel %vm43, %v48, %v47
  %vm50 = vcmp.lt.s32.totalorder %v34, 0
  %v51 = vsub.s32 0, %v34
  %v52 = vsel %vm50, %v51, %v34
  %v53 = vshrl.u32 %v52, 4
  %v54 = vand.u32 %v52, 15
  %v55 = vsub.s32 0, %v54
  %v56 = vsel %vm50, %v55, %v54
  %vm57 = vcmp.lt.s32.totalorder %v35, 0
  %v58 = vsub.s32 0, %v35
  %v59 = vsel %vm57, %v58, %v35
  %v60 = vshrl.u32 %v59, 4
  %v61 = vand.u32 %v59, 15
  %v62 = vsub.s32 0, %v61
  %v63 = vsel %vm57, %v62, %v61
  %vm64 = vcmp.ne.s32.totalorder %v42, 0
  %vm65 = vcmp.ne.s32.totalorder %v49, 0
  %vm66 = vcmp.ne.s32.totalorder %v56, 0
  %vm67 = vcmp.ne.s32.totalorder %v63, 0
  %vm68 = vcmp.lt.s32.totalorder %v42, 0
  %vm69 = vcmp.lt.s32.totalorder %v49, 0
  %vm70 = vcmp.lt.s32.totalorder %v56, 0
  %vm71 = vcmp.lt.s32.totalorder %v63, 0
  %vm72 = vmand %vm68, %vm64
  %vm73 = vmand %vm69, %vm65
  %vm74 = vmand %vm70, %vm66
  %vm75 = vmand %vm71, %vm67
  %v76 = vadd.s32 %v42, 16
  %v77 = vadd.s32 %v49, 16
  %v78 = vadd.s32 %v56, 16
  %v79 = vadd.s32 %v63, 16
  %v80 = vsel %vm72, %v76, %v42
  %v81 = vsel %vm73, %v77, %v49
  %v82 = vsel %vm74, %v78, %v56
  %v83 = vsel %vm75, %v79, %v63
  %vm84 = vcmp.eq.s32.totalorder %v80, 0
  %vm85 = vcmp.eq.s32.totalorder %v81, 0
  %vm86 = vcmp.eq.s32.totalorder %v82, 0
  %vm87 = vcmp.eq.s32.totalorder %v83, 0
  %v88 = vrot.slane %v27, 7
  %v89 = vrot.slane %v28, 7
  %v90 = vrot.slane %v29, 7
  %v91 = vrot.slane %v30, 7
  %vm92 = vcmp.lt.s32.totalorder %v32, 1
  %v93 = vsel %vm92, %v90, %v91
  %v94 = vsel %vm92, %v89, %v90
  %v95 = vsel %vm92, %v88, %v89
  %v96 = vsel %vm92, %v91, %v88
  %v97 = vsel %vm84, 1, 0
  %v98 = vsel %vm85, 1, 0
  %v99 = vsel %vm86, 1, 0
  %v100 = vsel %vm87, 1, 0
  %vm101 = vcmp.eq.s32.totalorder %v97, 1
  %vm102 = vcmp.eq.s32.totalorder %v98, 1
  %vm103 = vcmp.eq.s32.totalorder %v99, 1
  %vm104 = vcmp.eq.s32.totalorder %v100, 1
  %v105 = vsel %vm101, 0.0, %v96
  %v106 = vsel %vm102, 0.0, %v95
  %v107 = vsel %vm103, 0.0, %v94
  %v108 = vsel %vm104, 0.0, %v93
  %vm109 = vcmp.eq.s32.totalorder %v80, 15
  %vm110 = vcmp.eq.s32.totalorder %v81, 15
  %vm111 = vcmp.eq.s32.totalorder %v82, 15
  %vm112 = vcmp.eq.s32.totalorder %v83, 15
  %v113 = vrot.slane %v27, 1
  %v114 = vrot.slane %v28, 1
  %v115 = vrot.slane %v29, 1
  %v116 = vrot.slane %v30, 1
  %vm117 = vcmp.lt.s32.totalorder %v32, 7
  %v118 = vsel %vm117, %v115, %v116
  %v119 = vsel %vm117, %v114, %v115
  %v120 = vsel %vm117, %v113, %v114
  %v121 = vsel %vm117, %v116, %v113
  %v122 = vsel %vm109, 1, 0
  %v123 = vsel %vm110, 1, 0
  %v124 = vsel %vm111, 1, 0
  %v125 = vsel %vm112, 1, 0
  %vm126 = vcmp.eq.s32.totalorder %v122, 1
  %vm127 = vcmp.eq.s32.totalorder %v123, 1
  %vm128 = vcmp.eq.s32.totalorder %v124, 1
  %vm129 = vcmp.eq.s32.totalorder %v125, 1
  %v130 = vsel %vm126, 0.0, %v120
  %v131 = vsel %vm127, 0.0, %v119
  %v132 = vsel %vm128, 0.0, %v118
  %v133 = vsel %vm129, 0.0, %v121
  %v134 = vpack.c.bf16 %v106, %v105
  %v135 = vpack.c.bf16 %v108, %v107
  %v136 = vld [vmem:[%s1] sm:$0xf]
  %v137 = vld [vmem:[%s1 + $0x4] sm:$0xf]
  %v138 = vld [vmem:[%s1 + $0x8] sm:$0xf]
  %v139 = vld [vmem:[%s1 + $0xc] sm:$0xf]
  %v140 = vld [vmem:[%s1 + $0x10] sm:$0xf]
  %v141 = vld [vmem:[%s1 + $0x14] sm:$0xf]
  %v142 = vld [vmem:[%s1 + $0x18] sm:$0xf]
  %v143 = vld [vmem:[%s1 + $0x1c] sm:$0xf]
  %v144 = vpack.c.bf16 %v28, %v27
  %v145 = vpack.c.bf16 %v30, %v29
  %s146 = scalar_lea.vmem %s1, 32
  %v147 = vld [vmem:[%s146] sm:$0xf]
  %v148 = vld [vmem:[%s146 + $0x4] sm:$0xf]
  %v149 = vld [vmem:[%s146 + $0x8] sm:$0xf]
  %v150 = vld [vmem:[%s146 + $0xc] sm:$0xf]
  %v151 = vld [vmem:[%s146 + $0x10] sm:$0xf]
  %v152 = vld [vmem:[%s146 + $0x14] sm:$0xf]
  %v153 = vld [vmem:[%s146 + $0x18] sm:$0xf]
  %v154 = vld [vmem:[%s146 + $0x1c] sm:$0xf]
  %v163 = vunpack.c.l.b16 %v147
  %v164 = vunpack.c.l.b16 %v148
  %v165 = vunpack.c.l.b16 %v149
  %v166 = vunpack.c.l.b16 %v150
  %v167 = vunpack.c.l.b16 %v151
  %v168 = vunpack.c.l.b16 %v152
  %v169 = vunpack.c.l.b16 %v153
  %v170 = vunpack.c.l.b16 %v154
  %v171 = vpack.c.b16 %v164, %v163
  %v172 = vpack.c.b16 %v166, %v165
  %v173 = vpack.c.b16 %v168, %v167
  %v174 = vpack.c.b16 %v170, %v169
  %vm179 = vcmask 523264
  %v181 = vsel %vm179, %v144, 0
  %v184 = vsel %vm179, %v145, 0
  %186 = vmatprep.subr.bf16.mxu0 0
  %187 = vmatpush1.bf16.msra.mxu0 %v171
  %188 = vmatprep.subr.bf16.mxu0 0
  %189 = vmatpush1.bf16.msra.mxu0 %v172
  %190 = vmatprep.subr.bf16.mxu0 0
  %191 = vmatpush1.bf16.msra.mxu0 %v173
  %192 = vmatprep.subr.bf16.mxu0 0
  %193 = vmatpush1.bf16.msra.mxu0 %v174
  %194 = vmatprep.subr.bf16.mxu0 0
  %195 = vmatpush1.bf16.msra.mxu0 0
  %196 = vmatprep.subr.bf16.mxu0 0
  %197 = vmatpush1.bf16.msra.mxu0 0
  %198 = vmatprep.subr.bf16.mxu0 0
  %199 = vmatpush1.bf16.msra.mxu0 0
  %200 = vmatprep.subr.bf16.mxu0 0
  %201 = vmatpush1.bf16.msra.mxu0 0
  %202 = vmatprep.subr.bf16.mxu0 0
  %203 = vmatpush1.bf16.msra.mxu0 0
  %204 = vmatprep.subr.bf16.mxu0 0
  %205 = vmatpush1.bf16.msra.mxu0 0
  %206 = vmatprep.subr.bf16.mxu0 0
  %207 = vmatpush1.bf16.msra.mxu0 0
  %208 = vmatprep.subr.bf16.mxu0 0
  %209 = vmatpush1.bf16.msra.mxu0 0
  %210 = vmatprep.subr.bf16.mxu0 0
  %211 = vmatpush1.bf16.msra.mxu0 0
  %212 = vmatprep.subr.bf16.mxu0 0
  %213 = vmatpush1.bf16.msra.mxu0 0
  %214 = vmatprep.subr.bf16.mxu0 0
  %215 = vmatpush1.bf16.msra.mxu0 0
  %216 = vmatprep.subr.bf16.mxu0 0
  %217 = vmatpush1.bf16.msra.mxu0 0
  %218 = vmatprep.mubr.bf16.mxu0 0
  %219 = vmatmul.mubr.bf16.gmra.mrb[0].mxu0 %v181
  %v220 = vpop.f32.mrb[0].mxu0
  %v221 = vadd.f32 0.0, %v220
  %v222 = vpop.f32.mrb[0].mxu0
  %v223 = vpop.f32.mrb[0].mxu0
  %v224 = vadd.f32 0.0, %v223
  %v225 = vpop.f32.mrb[0].mxu0
  %226 = vmatprep.mubr.bf16.mxu0 0
  %227 = vmatmul.mubr.bf16.gmra.mrb[0].mxu0 %v184
  %v228 = vpop.f32.mrb[0].mxu0
  %v229 = vadd.f32 0.0, %v228
  %v230 = vpop.f32.mrb[0].mxu0
  %v231 = vpop.f32.mrb[0].mxu0
  %v232 = vadd.f32 0.0, %v231
  %v233 = vpop.f32.mrb[0].mxu0
  %234 = vdwg.mxu0
  %v243 = vunpack.c.l.b16 %v136
  %v244 = vunpack.c.l.b16 %v137
  %v245 = vunpack.c.l.b16 %v138
  %v246 = vunpack.c.l.b16 %v139
  %v247 = vunpack.c.l.b16 %v140
  %v248 = vunpack.c.l.b16 %v141
  %v249 = vunpack.c.l.b16 %v142
  %v250 = vunpack.c.l.b16 %v143
  %v251 = vpack.c.b16 %v244, %v243
  %v252 = vpack.c.b16 %v246, %v245
  %v253 = vpack.c.b16 %v248, %v247
  %v254 = vpack.c.b16 %v250, %v249
  %v260 = vsel %vm179, %v134, 0
  %v263 = vsel %vm179, %v135, 0
  %265 = vmatprep.subr.bf16.mxu0 0
  %266 = vmatpush1.bf16.msra.mxu0 %v251
  %267 = vmatprep.subr.bf16.mxu0 0
  %268 = vmatpush1.bf16.msra.mxu0 %v252
  %269 = vmatprep.subr.bf16.mxu0 0
  %270 = vmatpush1.bf16.msra.mxu0 %v253
  %271 = vmatprep.subr.bf16.mxu0 0
  %272 = vmatpush1.bf16.msra.mxu0 %v254
  %273 = vmatprep.subr.bf16.mxu0 0
  %274 = vmatpush1.bf16.msra.mxu0 0
  %275 = vmatprep.subr.bf16.mxu0 0
  %276 = vmatpush1.bf16.msra.mxu0 0
  %277 = vmatprep.subr.bf16.mxu0 0
  %278 = vmatpush1.bf16.msra.mxu0 0
  %279 = vmatprep.subr.bf16.mxu0 0
  %280 = vmatpush1.bf16.msra.mxu0 0
  %281 = vmatprep.subr.bf16.mxu0 0
  %282 = vmatpush1.bf16.msra.mxu0 0
  %283 = vmatprep.subr.bf16.mxu0 0
  %284 = vmatpush1.bf16.msra.mxu0 0
  %285 = vmatprep.subr.bf16.mxu0 0
  %286 = vmatpush1.bf16.msra.mxu0 0
  %287 = vmatprep.subr.bf16.mxu0 0
  %288 = vmatpush1.bf16.msra.mxu0 0
  %289 = vmatprep.subr.bf16.mxu0 0
  %290 = vmatpush1.bf16.msra.mxu0 0
  %291 = vmatprep.subr.bf16.mxu0 0
  %292 = vmatpush1.bf16.msra.mxu0 0
  %293 = vmatprep.subr.bf16.mxu0 0
  %294 = vmatpush1.bf16.msra.mxu0 0
  %295 = vmatprep.subr.bf16.mxu0 0
  %296 = vmatpush1.bf16.msra.mxu0 0
  %297 = vmatprep.mubr.bf16.mxu0 0
  %298 = vmatmul.mubr.bf16.gmra.mrb[0].mxu0 %v260
  %v299 = vpop.f32.mrb[0].mxu0
  %v300 = vadd.f32 %v221, %v299
  %v301 = vpop.f32.mrb[0].mxu0
  %v302 = vpop.f32.mrb[0].mxu0
  %v303 = vadd.f32 %v224, %v302
  %v304 = vpop.f32.mrb[0].mxu0
  %305 = vmatprep.mubr.bf16.mxu0 0
  %306 = vmatmul.mubr.bf16.gmra.mrb[0].mxu0 %v263
  %v307 = vpop.f32.mrb[0].mxu0
  %v308 = vadd.f32 %v229, %v307
  %v309 = vpop.f32.mrb[0].mxu0
  %v310 = vpop.f32.mrb[0].mxu0
  %v311 = vadd.f32 %v232, %v310
  %v312 = vpop.f32.mrb[0].mxu0
  %313 = vdwg.mxu0
  %v314 = vpack.c.bf16 %v131, %v130
  %v315 = vpack.c.bf16 %v133, %v132
  %s316 = scalar_lea.vmem %s1, 64
  %v317 = vld [vmem:[%s316] sm:$0xf]
  %v318 = vld [vmem:[%s316 + $0x4] sm:$0xf]
  %v319 = vld [vmem:[%s316 + $0x8] sm:$0xf]
  %v320 = vld [vmem:[%s316 + $0xc] sm:$0xf]
  %v321 = vld [vmem:[%s316 + $0x10] sm:$0xf]
  %v322 = vld [vmem:[%s316 + $0x14] sm:$0xf]
  %v323 = vld [vmem:[%s316 + $0x18] sm:$0xf]
  %v324 = vld [vmem:[%s316 + $0x1c] sm:$0xf]
  %v333 = vunpack.c.l.b16 %v317
  %v334 = vunpack.c.l.b16 %v318
  %v335 = vunpack.c.l.b16 %v319
  %v336 = vunpack.c.l.b16 %v320
  %v337 = vunpack.c.l.b16 %v321
  %v338 = vunpack.c.l.b16 %v322
  %v339 = vunpack.c.l.b16 %v323
  %v340 = vunpack.c.l.b16 %v324
  %v341 = vpack.c.b16 %v334, %v333
  %v342 = vpack.c.b16 %v336, %v335
  %v343 = vpack.c.b16 %v338, %v337
  %v344 = vpack.c.b16 %v340, %v339
  %v350 = vsel %vm179, %v314, 0
  %v353 = vsel %vm179, %v315, 0
  %355 = vmatprep.subr.bf16.mxu0 0
  %356 = vmatpush1.bf16.msra.mxu0 %v341
  %357 = vmatprep.subr.bf16.mxu0 0
  %358 = vmatpush1.bf16.msra.mxu0 %v342
  %359 = vmatprep.subr.bf16.mxu0 0
  %360 = vmatpush1.bf16.msra.mxu0 %v343
  %361 = vmatprep.subr.bf16.mxu0 0
  %362 = vmatpush1.bf16.msra.mxu0 %v344
  %363 = vmatprep.subr.bf16.mxu0 0
  %364 = vmatpush1.bf16.msra.mxu0 0
  %365 = vmatprep.subr.bf16.mxu0 0
  %366 = vmatpush1.bf16.msra.mxu0 0
  %367 = vmatprep.subr.bf16.mxu0 0
  %368 = vmatpush1.bf16.msra.mxu0 0
  %369 = vmatprep.subr.bf16.mxu0 0
  %370 = vmatpush1.bf16.msra.mxu0 0
  %371 = vmatprep.subr.bf16.mxu0 0
  %372 = vmatpush1.bf16.msra.mxu0 0
  %373 = vmatprep.subr.bf16.mxu0 0
  %374 = vmatpush1.bf16.msra.mxu0 0
  %375 = vmatprep.subr.bf16.mxu0 0
  %376 = vmatpush1.bf16.msra.mxu0 0
  %377 = vmatprep.subr.bf16.mxu0 0
  %378 = vmatpush1.bf16.msra.mxu0 0
  %379 = vmatprep.subr.bf16.mxu0 0
  %380 = vmatpush1.bf16.msra.mxu0 0
  %381 = vmatprep.subr.bf16.mxu0 0
  %382 = vmatpush1.bf16.msra.mxu0 0
  %383 = vmatprep.subr.bf16.mxu0 0
  %384 = vmatpush1.bf16.msra.mxu0 0
  %385 = vmatprep.subr.bf16.mxu0 0
  %386 = vmatpush1.bf16.msra.mxu0 0
  %387 = vmatprep.mubr.bf16.mxu0 0
  %388 = vmatmul.mubr.bf16.gmra.mrb[0].mxu0 %v350
  %v389 = vpop.f32.mrb[0].mxu0
  %v390 = vadd.f32 0.0, %v389
  %v391 = vpop.f32.mrb[0].mxu0
  %v392 = vpop.f32.mrb[0].mxu0
  %v393 = vadd.f32 0.0, %v392
  %v394 = vpop.f32.mrb[0].mxu0
  %395 = vmatprep.mubr.bf16.mxu0 0
  %396 = vmatmul.mubr.bf16.gmra.mrb[0].mxu0 %v353
  %v397 = vpop.f32.mrb[0].mxu0
  %v398 = vadd.f32 0.0, %v397
  %v399 = vpop.f32.mrb[0].mxu0
  %v400 = vpop.f32.mrb[0].mxu0
  %v401 = vadd.f32 0.0, %v400
  %v402 = vpop.f32.mrb[0].mxu0
  %403 = vdwg.mxu0
  %v404 = vadd.f32 %v300, %v390
  %v405 = vadd.f32 %v303, %v393
  %v406 = vadd.f32 %v308, %v398
  %v407 = vadd.f32 %v311, %v401
  %v408 = vld [vmem:[%s2] sm:$0x1]
  %v409 = vld [vmem:[%s3] sm:$0x1]
  %v410 = vadd.f32 %v404, %v405
  %v411 = vadd.f32 %v410, %v406
  %v412 = vadd.f32 %v411, %v407
  %v413 = vrot.slane %v412, 4
  %v414 = vadd.f32 %v412, %v413
  %v415 = vrot.slane %v414, 2
  %v416 = vadd.f32 %v414, %v415
  %v417 = vrot.slane %v416, 1
  %v418 = vadd.f32 %v416, %v417
  %v419 = vmul.f32 %v404, %v404
  %v420 = vmul.f32 %v405, %v405
  %v421 = vmul.f32 %v406, %v406
  %v422 = vmul.f32 %v407, %v407
  %v423 = vadd.f32 %v419, %v420
  %v424 = vadd.f32 %v423, %v421
  %v425 = vadd.f32 %v424, %v422
  %v426 = vrot.slane %v425, 4
  %v427 = vadd.f32 %v425, %v426
  %v428 = vrot.slane %v427, 2
  %v429 = vadd.f32 %v427, %v428
  %v430 = vrot.slane %v429, 1
  %v431 = vadd.f32 %v429, %v430
  %432 = vrot.lane.b32.xlu0 %v418, 8
  %v433 = vpop.permute.xlu0 %432
  %v434 = vadd.f32 %v418, %v433
  %435 = vrot.lane.b32.xlu0 %v431, 8
  %v436 = vpop.permute.xlu0 %435
  %v437 = vadd.f32 %v431, %v436
  %438 = vrot.lane.b32.xlu0 %v434, 16
  %v439 = vpop.permute.xlu0 %438
  %v440 = vadd.f32 %v434, %v439
  %441 = vrot.lane.b32.xlu0 %v437, 16
  %v442 = vpop.permute.xlu0 %441
  %v443 = vadd.f32 %v437, %v442
  %444 = vrot.lane.b32.xlu0 %v440, 32
  %v445 = vpop.permute.xlu0 %444
  %v446 = vadd.f32 %v440, %v445
  %447 = vrot.lane.b32.xlu0 %v443, 32
  %v448 = vpop.permute.xlu0 %447
  %v449 = vadd.f32 %v443, %v448
  %450 = vrot.lane.b32.xlu0 %v446, 64
  %v451 = vpop.permute.xlu0 %450
  %v452 = vadd.f32 %v446, %v451
  %453 = vrot.lane.b32.xlu0 %v449, 64
  %v454 = vpop.permute.xlu0 %453
  %v455 = vadd.f32 %v449, %v454
  %v456 = vmul.f32 %v452, 0.001953125
  %v457 = vmul.f32 %v455, 0.001953125
  %v458 = vmul.f32 %v456, %v456
  %v459 = vsub.f32 %v457, %v458
  %v460 = vmax.f32 %v459, 0.0
  %v461 = vadd.f32 %v460, 1e-05
  %v462 = vrsqrt.pop %v461
  %v463 = vmul.f32 %v408, %v462
  %v464 = vmul.f32 %v456, %v463
  %v465 = vsub.f32 %v409, %v464
  %v467 = vlaneseq
  %v468 = vshrl.u32 %v467, 7
  %v469 = vsub.s32 0, %v468
  %v470 = vrot.slane %v463, %v469
  %v472 = vmul.f32 %v404, %v470
  %v473 = vmul.f32 %v405, %v470
  %v474 = vmul.f32 %v406, %v470
  %v475 = vmul.f32 %v407, %v470
  %v477 = vlaneseq
  %v478 = vshrl.u32 %v477, 7
  %v479 = vsub.s32 0, %v478
  %v480 = vrot.slane %v465, %v479
  %v482 = vadd.f32 %v472, %v480
  %v483 = vadd.f32 %v473, %v480
  %v484 = vadd.f32 %v474, %v480
  %v485 = vadd.f32 %v475, %v480
  %v486 = vmax.f32 %v482, 0.0
  %v487 = vmax.f32 %v483, 0.0
  %v488 = vmax.f32 %v484, 0.0
  %v489 = vmax.f32 %v485, 0.0
  %v490 = vrot.slane %v486, 7
  %v491 = vrot.slane %v487, 7
  %v492 = vrot.slane %v488, 7
  %v493 = vrot.slane %v489, 7
  %v494 = vsel %vm92, %v492, %v493
  %v495 = vsel %vm92, %v491, %v492
  %v496 = vsel %vm92, %v490, %v491
  %v497 = vsel %vm92, %v493, %v490
  %v498 = vsel %vm101, 0.0, %v497
  %v499 = vsel %vm102, 0.0, %v496
  %v500 = vsel %vm103, 0.0, %v495
  %v501 = vsel %vm104, 0.0, %v494
  %v502 = vrot.slane %v486, 1
  %v503 = vrot.slane %v487, 1
  %v504 = vrot.slane %v488, 1
  %v505 = vrot.slane %v489, 1
  %v506 = vsel %vm117, %v504, %v505
  %v507 = vsel %vm117, %v503, %v504
  %v508 = vsel %vm117, %v502, %v503
  %v509 = vsel %vm117, %v505, %v502
  %v510 = vsel %vm126, 0.0, %v508
  %v511 = vsel %vm127, 0.0, %v507
  %v512 = vsel %vm128, 0.0, %v506
  %v513 = vsel %vm129, 0.0, %v509
  %v514 = vpack.c.bf16 %v499, %v498
  %v515 = vpack.c.bf16 %v501, %v500
  %v516 = vld [vmem:[%s4] sm:$0xf]
  %v517 = vld [vmem:[%s4 + $0x4] sm:$0xf]
  %v518 = vld [vmem:[%s4 + $0x8] sm:$0xf]
  %v519 = vld [vmem:[%s4 + $0xc] sm:$0xf]
  %v520 = vld [vmem:[%s4 + $0x10] sm:$0xf]
  %v521 = vld [vmem:[%s4 + $0x14] sm:$0xf]
  %v522 = vld [vmem:[%s4 + $0x18] sm:$0xf]
  %v523 = vld [vmem:[%s4 + $0x1c] sm:$0xf]
  %v524 = vld [vmem:[%s4 + $0x20] sm:$0xf]
  %v525 = vld [vmem:[%s4 + $0x24] sm:$0xf]
  %v526 = vld [vmem:[%s4 + $0x28] sm:$0xf]
  %v527 = vld [vmem:[%s4 + $0x2c] sm:$0xf]
  %v528 = vld [vmem:[%s4 + $0x30] sm:$0xf]
  %v529 = vld [vmem:[%s4 + $0x34] sm:$0xf]
  %v530 = vld [vmem:[%s4 + $0x38] sm:$0xf]
  %v531 = vld [vmem:[%s4 + $0x3c] sm:$0xf]
  %v532 = vpack.c.bf16 %v487, %v486
  %v533 = vpack.c.bf16 %v489, %v488
  %s534 = scalar_lea.vmem %s4, 64
  %v535 = vld [vmem:[%s534] sm:$0xf]
  %v536 = vld [vmem:[%s534 + $0x4] sm:$0xf]
  %v537 = vld [vmem:[%s534 + $0x8] sm:$0xf]
  %v538 = vld [vmem:[%s534 + $0xc] sm:$0xf]
  %v539 = vld [vmem:[%s534 + $0x10] sm:$0xf]
  %v540 = vld [vmem:[%s534 + $0x14] sm:$0xf]
  %v541 = vld [vmem:[%s534 + $0x18] sm:$0xf]
  %v542 = vld [vmem:[%s534 + $0x1c] sm:$0xf]
  %v543 = vld [vmem:[%s534 + $0x20] sm:$0xf]
  %v544 = vld [vmem:[%s534 + $0x24] sm:$0xf]
  %v545 = vld [vmem:[%s534 + $0x28] sm:$0xf]
  %v546 = vld [vmem:[%s534 + $0x2c] sm:$0xf]
  %v547 = vld [vmem:[%s534 + $0x30] sm:$0xf]
  %v548 = vld [vmem:[%s534 + $0x34] sm:$0xf]
  %v549 = vld [vmem:[%s534 + $0x38] sm:$0xf]
  %v550 = vld [vmem:[%s534 + $0x3c] sm:$0xf]
  %v567 = vunpack.c.l.b16 %v535
  %v568 = vunpack.c.l.b16 %v536
  %v569 = vunpack.c.l.b16 %v537
  %v570 = vunpack.c.l.b16 %v538
  %v571 = vunpack.c.l.b16 %v539
  %v572 = vunpack.c.l.b16 %v540
  %v573 = vunpack.c.l.b16 %v541
  %v574 = vunpack.c.l.b16 %v542
  %v575 = vunpack.c.l.b16 %v543
  %v576 = vunpack.c.l.b16 %v544
  %v577 = vunpack.c.l.b16 %v545
  %v578 = vunpack.c.l.b16 %v546
  %v579 = vunpack.c.l.b16 %v547
  %v580 = vunpack.c.l.b16 %v548
  %v581 = vunpack.c.l.b16 %v549
  %v582 = vunpack.c.l.b16 %v550
  %v583 = vpack.c.b16 %v568, %v567
  %v584 = vpack.c.b16 %v570, %v569
  %v585 = vpack.c.b16 %v572, %v571
  %v586 = vpack.c.b16 %v574, %v573
  %v587 = vpack.c.b16 %v576, %v575
  %v588 = vpack.c.b16 %v578, %v577
  %v589 = vpack.c.b16 %v580, %v579
  %v590 = vpack.c.b16 %v582, %v581
  %599 = vmatprep.subr.bf16.mxu0 0
  %600 = vmatpush1.bf16.msra.mxu0 %v583
  %601 = vmatprep.subr.bf16.mxu0 0
  %602 = vmatpush1.bf16.msra.mxu0 %v584
  %603 = vmatprep.subr.bf16.mxu0 0
  %604 = vmatpush1.bf16.msra.mxu0 %v585
  %605 = vmatprep.subr.bf16.mxu0 0
  %606 = vmatpush1.bf16.msra.mxu0 %v586
  %607 = vmatprep.subr.bf16.mxu0 0
  %608 = vmatpush1.bf16.msra.mxu0 %v587
  %609 = vmatprep.subr.bf16.mxu0 0
  %610 = vmatpush1.bf16.msra.mxu0 %v588
  %611 = vmatprep.subr.bf16.mxu0 0
  %612 = vmatpush1.bf16.msra.mxu0 %v589
  %613 = vmatprep.subr.bf16.mxu0 0
  %614 = vmatpush1.bf16.msra.mxu0 %v590
  %615 = vmatprep.subr.bf16.mxu0 0
  %616 = vmatpush1.bf16.msra.mxu0 0
  %617 = vmatprep.subr.bf16.mxu0 0
  %618 = vmatpush1.bf16.msra.mxu0 0
  %619 = vmatprep.subr.bf16.mxu0 0
  %620 = vmatpush1.bf16.msra.mxu0 0
  %621 = vmatprep.subr.bf16.mxu0 0
  %622 = vmatpush1.bf16.msra.mxu0 0
  %623 = vmatprep.subr.bf16.mxu0 0
  %624 = vmatpush1.bf16.msra.mxu0 0
  %625 = vmatprep.subr.bf16.mxu0 0
  %626 = vmatpush1.bf16.msra.mxu0 0
  %627 = vmatprep.subr.bf16.mxu0 0
  %628 = vmatpush1.bf16.msra.mxu0 0
  %629 = vmatprep.subr.bf16.mxu0 0
  %630 = vmatpush1.bf16.msra.mxu0 0
  %631 = vmatprep.mubr.bf16.mxu0 0
  %632 = vmatmul.mubr.bf16.gmra.mrb[0].mxu0 %v532
  %v633 = vpop.f32.mrb[0].mxu0
  %v634 = vadd.f32 0.0, %v633
  %v635 = vpop.f32.mrb[0].mxu0
  %v636 = vpop.f32.mrb[0].mxu0
  %v637 = vadd.f32 0.0, %v636
  %v638 = vpop.f32.mrb[0].mxu0
  %639 = vmatprep.mubr.bf16.mxu0 0
  %640 = vmatmul.mubr.bf16.gmra.mrb[0].mxu0 %v533
  %v641 = vpop.f32.mrb[0].mxu0
  %v642 = vadd.f32 0.0, %v641
  %v643 = vpop.f32.mrb[0].mxu0
  %v644 = vpop.f32.mrb[0].mxu0
  %v645 = vadd.f32 0.0, %v644
  %v646 = vpop.f32.mrb[0].mxu0
  %647 = vdwg.mxu0
  %v664 = vunpack.c.l.b16 %v516
  %v665 = vunpack.c.l.b16 %v517
  %v666 = vunpack.c.l.b16 %v518
  %v667 = vunpack.c.l.b16 %v519
  %v668 = vunpack.c.l.b16 %v520
  %v669 = vunpack.c.l.b16 %v521
  %v670 = vunpack.c.l.b16 %v522
  %v671 = vunpack.c.l.b16 %v523
  %v672 = vunpack.c.l.b16 %v524
  %v673 = vunpack.c.l.b16 %v525
  %v674 = vunpack.c.l.b16 %v526
  %v675 = vunpack.c.l.b16 %v527
  %v676 = vunpack.c.l.b16 %v528
  %v677 = vunpack.c.l.b16 %v529
  %v678 = vunpack.c.l.b16 %v530
  %v679 = vunpack.c.l.b16 %v531
  %v680 = vpack.c.b16 %v665, %v664
  %v681 = vpack.c.b16 %v667, %v666
  %v682 = vpack.c.b16 %v669, %v668
  %v683 = vpack.c.b16 %v671, %v670
  %v684 = vpack.c.b16 %v673, %v672
  %v685 = vpack.c.b16 %v675, %v674
  %v686 = vpack.c.b16 %v677, %v676
  %v687 = vpack.c.b16 %v679, %v678
  %696 = vmatprep.subr.bf16.mxu0 0
  %697 = vmatpush1.bf16.msra.mxu0 %v680
  %698 = vmatprep.subr.bf16.mxu0 0
  %699 = vmatpush1.bf16.msra.mxu0 %v681
  %700 = vmatprep.subr.bf16.mxu0 0
  %701 = vmatpush1.bf16.msra.mxu0 %v682
  %702 = vmatprep.subr.bf16.mxu0 0
  %703 = vmatpush1.bf16.msra.mxu0 %v683
  %704 = vmatprep.subr.bf16.mxu0 0
  %705 = vmatpush1.bf16.msra.mxu0 %v684
  %706 = vmatprep.subr.bf16.mxu0 0
  %707 = vmatpush1.bf16.msra.mxu0 %v685
  %708 = vmatprep.subr.bf16.mxu0 0
  %709 = vmatpush1.bf16.msra.mxu0 %v686
  %710 = vmatprep.subr.bf16.mxu0 0
  %711 = vmatpush1.bf16.msra.mxu0 %v687
  %712 = vmatprep.subr.bf16.mxu0 0
  %713 = vmatpush1.bf16.msra.mxu0 0
  %714 = vmatprep.subr.bf16.mxu0 0
  %715 = vmatpush1.bf16.msra.mxu0 0
  %716 = vmatprep.subr.bf16.mxu0 0
  %717 = vmatpush1.bf16.msra.mxu0 0
  %718 = vmatprep.subr.bf16.mxu0 0
  %719 = vmatpush1.bf16.msra.mxu0 0
  %720 = vmatprep.subr.bf16.mxu0 0
  %721 = vmatpush1.bf16.msra.mxu0 0
  %722 = vmatprep.subr.bf16.mxu0 0
  %723 = vmatpush1.bf16.msra.mxu0 0
  %724 = vmatprep.subr.bf16.mxu0 0
  %725 = vmatpush1.bf16.msra.mxu0 0
  %726 = vmatprep.subr.bf16.mxu0 0
  %727 = vmatpush1.bf16.msra.mxu0 0
  %728 = vmatprep.mubr.bf16.mxu0 0
  %729 = vmatmul.mubr.bf16.gmra.mrb[0].mxu0 %v514
  %v730 = vpop.f32.mrb[0].mxu0
  %v731 = vadd.f32 %v634, %v730
  %v732 = vpop.f32.mrb[0].mxu0
  %v733 = vpop.f32.mrb[0].mxu0
  %v734 = vadd.f32 %v637, %v733
  %v735 = vpop.f32.mrb[0].mxu0
  %736 = vmatprep.mubr.bf16.mxu0 0
  %737 = vmatmul.mubr.bf16.gmra.mrb[0].mxu0 %v515
  %v738 = vpop.f32.mrb[0].mxu0
  %v739 = vadd.f32 %v642, %v738
  %v740 = vpop.f32.mrb[0].mxu0
  %v741 = vpop.f32.mrb[0].mxu0
  %v742 = vadd.f32 %v645, %v741
  %v743 = vpop.f32.mrb[0].mxu0
  %744 = vdwg.mxu0
  %v745 = vpack.c.bf16 %v511, %v510
  %v746 = vpack.c.bf16 %v513, %v512
  %s747 = scalar_lea.vmem %s4, 128
  %v748 = vld [vmem:[%s747] sm:$0xf]
  %v749 = vld [vmem:[%s747 + $0x4] sm:$0xf]
  %v750 = vld [vmem:[%s747 + $0x8] sm:$0xf]
  %v751 = vld [vmem:[%s747 + $0xc] sm:$0xf]
  %v752 = vld [vmem:[%s747 + $0x10] sm:$0xf]
  %v753 = vld [vmem:[%s747 + $0x14] sm:$0xf]
  %v754 = vld [vmem:[%s747 + $0x18] sm:$0xf]
  %v755 = vld [vmem:[%s747 + $0x1c] sm:$0xf]
  %v756 = vld [vmem:[%s747 + $0x20] sm:$0xf]
  %v757 = vld [vmem:[%s747 + $0x24] sm:$0xf]
  %v758 = vld [vmem:[%s747 + $0x28] sm:$0xf]
  %v759 = vld [vmem:[%s747 + $0x2c] sm:$0xf]
  %v760 = vld [vmem:[%s747 + $0x30] sm:$0xf]
  %v761 = vld [vmem:[%s747 + $0x34] sm:$0xf]
  %v762 = vld [vmem:[%s747 + $0x38] sm:$0xf]
  %v763 = vld [vmem:[%s747 + $0x3c] sm:$0xf]
  %v780 = vunpack.c.l.b16 %v748
  %v781 = vunpack.c.l.b16 %v749
  %v782 = vunpack.c.l.b16 %v750
  %v783 = vunpack.c.l.b16 %v751
  %v784 = vunpack.c.l.b16 %v752
  %v785 = vunpack.c.l.b16 %v753
  %v786 = vunpack.c.l.b16 %v754
  %v787 = vunpack.c.l.b16 %v755
  %v788 = vunpack.c.l.b16 %v756
  %v789 = vunpack.c.l.b16 %v757
  %v790 = vunpack.c.l.b16 %v758
  %v791 = vunpack.c.l.b16 %v759
  %v792 = vunpack.c.l.b16 %v760
  %v793 = vunpack.c.l.b16 %v761
  %v794 = vunpack.c.l.b16 %v762
  %v795 = vunpack.c.l.b16 %v763
  %v796 = vpack.c.b16 %v781, %v780
  %v797 = vpack.c.b16 %v783, %v782
  %v798 = vpack.c.b16 %v785, %v784
  %v799 = vpack.c.b16 %v787, %v786
  %v800 = vpack.c.b16 %v789, %v788
  %v801 = vpack.c.b16 %v791, %v790
  %v802 = vpack.c.b16 %v793, %v792
  %v803 = vpack.c.b16 %v795, %v794
  %812 = vmatprep.subr.bf16.mxu0 0
  %813 = vmatpush1.bf16.msra.mxu0 %v796
  %814 = vmatprep.subr.bf16.mxu0 0
  %815 = vmatpush1.bf16.msra.mxu0 %v797
  %816 = vmatprep.subr.bf16.mxu0 0
  %817 = vmatpush1.bf16.msra.mxu0 %v798
  %818 = vmatprep.subr.bf16.mxu0 0
  %819 = vmatpush1.bf16.msra.mxu0 %v799
  %820 = vmatprep.subr.bf16.mxu0 0
  %821 = vmatpush1.bf16.msra.mxu0 %v800
  %822 = vmatprep.subr.bf16.mxu0 0
  %823 = vmatpush1.bf16.msra.mxu0 %v801
  %824 = vmatprep.subr.bf16.mxu0 0
  %825 = vmatpush1.bf16.msra.mxu0 %v802
  %826 = vmatprep.subr.bf16.mxu0 0
  %827 = vmatpush1.bf16.msra.mxu0 %v803
  %828 = vmatprep.subr.bf16.mxu0 0
  %829 = vmatpush1.bf16.msra.mxu0 0
  %830 = vmatprep.subr.bf16.mxu0 0
  %831 = vmatpush1.bf16.msra.mxu0 0
  %832 = vmatprep.subr.bf16.mxu0 0
  %833 = vmatpush1.bf16.msra.mxu0 0
  %834 = vmatprep.subr.bf16.mxu0 0
  %835 = vmatpush1.bf16.msra.mxu0 0
  %836 = vmatprep.subr.bf16.mxu0 0
  %837 = vmatpush1.bf16.msra.mxu0 0
  %838 = vmatprep.subr.bf16.mxu0 0
  %839 = vmatpush1.bf16.msra.mxu0 0
  %840 = vmatprep.subr.bf16.mxu0 0
  %841 = vmatpush1.bf16.msra.mxu0 0
  %842 = vmatprep.subr.bf16.mxu0 0
  %843 = vmatpush1.bf16.msra.mxu0 0
  %844 = vmatprep.mubr.bf16.mxu0 0
  %845 = vmatmul.mubr.bf16.gmra.mrb[0].mxu0 %v745
  %v846 = vpop.f32.mrb[0].mxu0
  %v847 = vadd.f32 0.0, %v846
  %v848 = vpop.f32.mrb[0].mxu0
  %v849 = vpop.f32.mrb[0].mxu0
  %v850 = vadd.f32 0.0, %v849
  %v851 = vpop.f32.mrb[0].mxu0
  %852 = vmatprep.mubr.bf16.mxu0 0
  %853 = vmatmul.mubr.bf16.gmra.mrb[0].mxu0 %v746
  %v854 = vpop.f32.mrb[0].mxu0
  %v855 = vadd.f32 0.0, %v854
  %v856 = vpop.f32.mrb[0].mxu0
  %v857 = vpop.f32.mrb[0].mxu0
  %v858 = vadd.f32 0.0, %v857
  %v859 = vpop.f32.mrb[0].mxu0
  %860 = vdwg.mxu0
  %v861 = vadd.f32 %v731, %v847
  %v862 = vadd.f32 %v734, %v850
  %v863 = vadd.f32 %v739, %v855
  %v864 = vadd.f32 %v742, %v858
  %v865 = vld [vmem:[%s5] sm:$0x1]
  %v866 = vld [vmem:[%s6] sm:$0x1]
  %v867 = vadd.f32 %v861, %v862
  %v868 = vadd.f32 %v867, %v863
  %v869 = vadd.f32 %v868, %v864
  %v870 = vrot.slane %v869, 4
  %v871 = vadd.f32 %v869, %v870
  %v872 = vrot.slane %v871, 2
  %v873 = vadd.f32 %v871, %v872
  %v874 = vrot.slane %v873, 1
  %v875 = vadd.f32 %v873, %v874
  %v876 = vmul.f32 %v861, %v861
  %v877 = vmul.f32 %v862, %v862
  %v878 = vmul.f32 %v863, %v863
  %v879 = vmul.f32 %v864, %v864
  %v880 = vadd.f32 %v876, %v877
  %v881 = vadd.f32 %v880, %v878
  %v882 = vadd.f32 %v881, %v879
  %v883 = vrot.slane %v882, 4
  %v884 = vadd.f32 %v882, %v883
  %v885 = vrot.slane %v884, 2
  %v886 = vadd.f32 %v884, %v885
  %v887 = vrot.slane %v886, 1
  %v888 = vadd.f32 %v886, %v887
  %889 = vrot.lane.b32.xlu0 %v875, 8
  %v890 = vpop.permute.xlu0 %889
  %v891 = vadd.f32 %v875, %v890
  %892 = vrot.lane.b32.xlu0 %v888, 8
  %v893 = vpop.permute.xlu0 %892
  %v894 = vadd.f32 %v888, %v893
  %895 = vrot.lane.b32.xlu0 %v891, 16
  %v896 = vpop.permute.xlu0 %895
  %v897 = vadd.f32 %v891, %v896
  %898 = vrot.lane.b32.xlu0 %v894, 16
  %v899 = vpop.permute.xlu0 %898
  %v900 = vadd.f32 %v894, %v899
  %901 = vrot.lane.b32.xlu0 %v897, 32
  %v902 = vpop.permute.xlu0 %901
  %v903 = vadd.f32 %v897, %v902
  %904 = vrot.lane.b32.xlu0 %v900, 32
  %v905 = vpop.permute.xlu0 %904
  %v906 = vadd.f32 %v900, %v905
  %907 = vrot.lane.b32.xlu0 %v903, 64
  %v908 = vpop.permute.xlu0 %907
  %v909 = vadd.f32 %v903, %v908
  %910 = vrot.lane.b32.xlu0 %v906, 64
  %v911 = vpop.permute.xlu0 %910
  %v912 = vadd.f32 %v906, %v911
  %v913 = vmul.f32 %v909, 0.001953125
  %v914 = vmul.f32 %v912, 0.001953125
  %v915 = vmul.f32 %v913, %v913
  %v916 = vsub.f32 %v914, %v915
  %v917 = vmax.f32 %v916, 0.0
  %v918 = vadd.f32 %v917, 1e-05
  %v919 = vrsqrt.pop %v918
  %v920 = vmul.f32 %v865, %v919
  %v921 = vmul.f32 %v913, %v920
  %v922 = vsub.f32 %v866, %v921
  %v924 = vlaneseq
  %v925 = vshrl.u32 %v924, 7
  %v926 = vsub.s32 0, %v925
  %v927 = vrot.slane %v920, %v926
  %v929 = vmul.f32 %v861, %v927
  %v930 = vmul.f32 %v862, %v927
  %v931 = vmul.f32 %v863, %v927
  %v932 = vmul.f32 %v864, %v927
  %v934 = vlaneseq
  %v935 = vshrl.u32 %v934, 7
  %v936 = vsub.s32 0, %v935
  %v937 = vrot.slane %v922, %v936
  %v939 = vadd.f32 %v929, %v937
  %v940 = vadd.f32 %v930, %v937
  %v941 = vadd.f32 %v931, %v937
  %v942 = vadd.f32 %v932, %v937
  %v943 = vmax.f32 %v939, 0.0
  %v944 = vmax.f32 %v940, 0.0
  %v945 = vmax.f32 %v941, 0.0
  %v946 = vmax.f32 %v942, 0.0
  %947 = vst [vmem:[%s7] sm:$0xff] %v943
  %948 = vst [vmem:[%s7 + $0x8] sm:$0xff] %v944
  %949 = vst [vmem:[%s7 + $0x10] sm:$0xff] %v945
  %950 = vst [vmem:[%s7 + $0x18] sm:$0xff] %v946
  // Predicated region
  $region30: #{conv_block_forward.1} parent=0 // pred_check
    _
  $region31: #{conv_block_forward.1} parent=0 // pred_check_branch
    %952 = sbr.rel (0) target = $region33
  $region32: #{conv_block_forward.1} parent=0 // pred_region
    _
  $region33: #{conv_block_forward.1} parent=0 // pred_fallthru
    _
  // Predicated region
  $region34: #{conv_block_forward.1} parent=0 // pred_check
    _
  $region35: #{conv_block_forward.1} parent=0 // pred_check_branch
    %954 = sbr.rel (0) target = $region37
  $region36: #{conv_block_forward.1} parent=0 // pred_region
    _
  $region37: #{conv_block_forward.1} parent=0 // pred_fallthru
    _

</llo_original>
